<compile_context>
chip_gen: v7x
topology: tpu7x:2x2x1
jax: 0.10.0
libtpu: 0.0.40
codegen_flags: <defaults>
</compile_context>

<pallas_src>
import functools

import jax
import jax.numpy as jnp
from jax.experimental import pallas as pl
from jax.experimental.pallas import tpu as pltpu


def djmodel_kernel(x_ref, wih_ref, r_ref, c0_ref, wfc_ref, bfc_ref, out_ref):
    """Single-invocation kernel: all Tx timesteps at once.

    x_ref   : (Tx*B, I)  bf16  X with row = t*B + b (built in the wrapper)
    wih_ref : (I, 4H)    bf16  W_ih^T, g-gate columns pre-scaled by 2
    r_ref   : (B, 4H)    f32   h0 @ W_hh^T + b_ih + b_hh, g columns pre-scaled by 2
    c0_ref  : (B, H)     f32   initial cell state (never updated in torch model)
    wfc_ref : (H, I)     bf16  dense layer weight^T
    bfc_ref : (1, I)     f32   dense layer bias
    out_ref : (Tx, B, I) f32   == torch.stack(out)
    """
    Tx, B, I = out_ref.shape
    H = c0_ref.shape[1]

    # --- Input contribution for ALL timesteps in a single MXU matmul. ---
    gx = jnp.dot(x_ref[...], wih_ref[...],
                 preferred_element_type=jnp.float32)              # (Tx*B, 4H) f32
    # Row t*B+b -> [t, b, :]; leading-dim split keeps the lane layout intact.
    # Hoisted recurrent term broadcast over the leading time axis (free vreg
    # replication, no sublane broadcast).
    gates = gx.reshape(Tx, B, 4 * H) + r_ref[...][None, :, :]     # (Tx, B, 4H)

    # --- One full-width sigmoid pass for all four gates. ---
    # g columns arrive pre-scaled by 2, so tanh(x) = 2*sigmoid(2x) - 1.
    sg = jax.nn.sigmoid(gates)
    i_g = sg[..., 0 * H:1 * H]
    f_g = sg[..., 1 * H:2 * H]
    g_g = 2.0 * sg[..., 2 * H:3 * H] - 1.0
    o_g = sg[..., 3 * H:4 * H]

    c = f_g * c0_ref[...][None, :, :] + i_g * g_g                 # (Tx, B, H) f32
    h = o_g * jnp.tanh(c)                                         # (Tx, B, H) f32

    # --- Final dense layer over all Tx*B rows in one MXU matmul. ---
    out = jnp.dot(h.reshape(Tx * B, H).astype(wfc_ref.dtype), wfc_ref[...],
                  preferred_element_type=jnp.float32) + bfc_ref[...]  # (Tx*B, I)

    # Rows are already in (t, b) order: a leading-dim-only reshape and ONE
    # dense store (no per-batch lane-offset store loop).
    out_ref[...] = out.reshape(Tx, B, I).astype(out_ref.dtype)


def djmodel_forward(X, params, *, dot_dtype=jnp.bfloat16):
    """X: (B, Tx, I) float32 (PyTorch layout).  Returns (Tx, B, I) float32."""
    B, Tx, I = X.shape
    H = params["h0"].shape[-1]

    # (t, b) row order so the kernel's fc output is already in output order.
    x2d = X.swapaxes(0, 1).reshape(Tx * B, I)

    # Hoisted recurrent term: identical for every timestep (and every call).
    r = params["h0"] @ params["w_hh"].T + (params["b_ih"] + params["b_hh"])  # (B, 4H)

    # Pre-scale ONLY the g-gate block (columns 2H:3H) by 2 so the kernel can
    # recover tanh from the single sigmoid pass via 2*sigmoid(2x) - 1.
    g_scale = jnp.concatenate(
        [jnp.ones((2 * H,), jnp.float32),
         jnp.full((H,), 2.0, jnp.float32),
         jnp.ones((H,), jnp.float32)])
    wih_t = params["w_ih"].T * g_scale[None, :]                   # (I, 4H)
    r = r * g_scale[None, :]                                      # (B, 4H)

    wfc_t = params["w_fc"].T                                      # (H, I)
    bfc = params["b_fc"].reshape(1, I)                            # (1, I)

    vmem = functools.partial(pl.BlockSpec, memory_space=pltpu.MemorySpace.VMEM)

    flops = 2 * Tx * B * I * 4 * H + 2 * Tx * B * H * I + 10 * Tx * B * H
    transcendentals = Tx * B * 5 * H            # sigmoid(4H) + tanh(H) per row
    bytes_accessed = (x2d.size * 2 + wih_t.size * 2 + wfc_t.size * 2
                      + r.size * 4 + params["c0"].size * 4 + bfc.size * 4
                      + Tx * B * I * 4)

    out = pl.pallas_call(
        djmodel_kernel,
        out_shape=jax.ShapeDtypeStruct((Tx, B, I), jnp.float32),
        in_specs=[vmem()] * 6,
        out_specs=vmem(),
        cost_estimate=pl.CostEstimate(
            flops=flops, transcendentals=transcendentals,
            bytes_accessed=bytes_accessed),
        compiler_params=pltpu.CompilerParams(
            vmem_limit_bytes=4 * 1024 * 1024),    # explicit, tiny footprint
    )(x2d.astype(dot_dtype),
      wih_t.astype(dot_dtype),
      r.astype(jnp.float32),
      params["c0"].astype(jnp.float32),
      wfc_t.astype(dot_dtype),
      bfc.astype(jnp.float32))

    return out


def djmodel_reference(X, p):
    """Pure-JAX f32 reference mirroring the PyTorch forward (sanity check)."""
    B, Tx, I = X.shape
    H = p["h0"].shape[-1]
    outs = []
    for t in range(Tx):
        x = X[:, t, :]
        gates = (x @ p["w_ih"].T + p["b_ih"]
                 + p["h0"] @ p["w_hh"].T + p["b_hh"])
        i = jax.nn.sigmoid(gates[:, 0 * H:1 * H])
        f = jax.nn.sigmoid(gates[:, 1 * H:2 * H])
        g = jnp.tanh(gates[:, 2 * H:3 * H])
        o = jax.nn.sigmoid(gates[:, 3 * H:4 * H])
        c = f * p["c0"] + i * g
        h = o * jnp.tanh(c)
        outs.append(h @ p["w_fc"].T + p["b_fc"])
    return jnp.stack(outs)


def init_params(key, input_size, hidden_size, batch_size):
    """Deterministic synthetic parameters matching nn.LSTMCell / nn.Linear shapes."""
    ks = jax.random.split(key, 8)
    bound = 1.0 / jnp.sqrt(hidden_size)
    u = lambda k, shape: jax.random.uniform(
        k, shape, jnp.float32, minval=-bound, maxval=bound)
    return {
        "w_ih": u(ks[0], (4 * hidden_size, input_size)),
        "w_hh": u(ks[1], (4 * hidden_size, hidden_size)),
        "b_ih": u(ks[2], (4 * hidden_size,)),
        "b_hh": u(ks[3], (4 * hidden_size,)),
        "w_fc": u(ks[4], (input_size, hidden_size)),
        "b_fc": u(ks[5], (input_size,)),
        # torch.randn initial states (never updated in the PyTorch forward)
        "h0": jax.random.normal(ks[6], (batch_size, hidden_size), jnp.float32),
        "c0": jax.random.normal(ks[7], (batch_size, hidden_size), jnp.float32),
    }


if __name__ == "__main__":
    # Small shapes consistent with the module (batch, Tx, input_size, hidden).
    # 4H = 128 (one vreg width of gates), Tx*B = 64 rows per matmul.
    B, Tx, I, H = 8, 8, 16, 32

    key = jax.random.PRNGKey(0)
    k_x, k_p = jax.random.split(key)
    X = jax.random.normal(k_x, (B, Tx, I), jnp.float32)
    params = init_params(k_p, input_size=I, hidden_size=H, batch_size=B)

    out = jax.block_until_ready(djmodel_forward(X, params))
    ref = djmodel_reference(X, params)

    assert out.shape == (Tx, B, I), out.shape
    assert jnp.all(jnp.isfinite(out))
    # bf16 MXU operands (f32 accumulation / f32 elementwise) vs pure-f32 ref.
    assert jnp.allclose(out, ref, rtol=2e-2, atol=2e-2), \
        float(jnp.max(jnp.abs(out - ref)))

    print("KERNEL_OK")
</pallas_src>

<mosaic_0001>
module attributes {stable_mosaic.version = 11 : i64} {
  func.func @djmodel_kernel(%arg0: memref<64x16xbf16, #tpu.memory_space<vmem>>, %arg1: memref<16x128xbf16, #tpu.memory_space<vmem>>, %arg2: memref<8x128xf32, #tpu.memory_space<vmem>>, %arg3: memref<8x32xf32, #tpu.memory_space<vmem>>, %arg4: memref<32x16xbf16, #tpu.memory_space<vmem>>, %arg5: memref<1x16xf32, #tpu.memory_space<vmem>>, %arg6: memref<8x8x16xf32, #tpu.memory_space<vmem>>) attributes {dimension_semantics = [], scalar_prefetch = 0 : i64, scratch_operands = 0 : i64, tpu.core_type = #tpu.core_type<tc>} {
    %c0 = arith.constant 0 : index
    %c0_0 = arith.constant 0 : index
    %0 = vector.load %arg0[%c0, %c0_0] : memref<64x16xbf16, #tpu.memory_space<vmem>>, vector<64x16xbf16>
    %c0_1 = arith.constant 0 : index
    %c0_2 = arith.constant 0 : index
    %1 = vector.load %arg1[%c0_1, %c0_2] : memref<16x128xbf16, #tpu.memory_space<vmem>>, vector<16x128xbf16>
    %cst = arith.constant dense<0.000000e+00> : vector<64x128xf32>
    %2 = tpu.matmul %0, %1, %cst {dimension_numbers = #tpu.dot_dimension_numbers<[1], [0], [0], [1], [0, 0, 1, 1], [], []>} : vector<64x16xbf16>, vector<16x128xbf16>, vector<64x128xf32> -> vector<64x128xf32>
    %3 = vector.shape_cast %2 : vector<64x128xf32> to vector<8x8x128xf32>
    %c0_3 = arith.constant 0 : index
    %c0_4 = arith.constant 0 : index
    %4 = vector.load %arg2[%c0_3, %c0_4] : memref<8x128xf32, #tpu.memory_space<vmem>>, vector<8x128xf32>
    %5 = vector.shape_cast %4 : vector<8x128xf32> to vector<1x8x128xf32>
    %6 = vector.broadcast %5 : vector<1x8x128xf32> to vector<8x8x128xf32>
    %7 = arith.addf %3, %6 : vector<8x8x128xf32>
    %8 = arith.negf %7 : vector<8x8x128xf32>
    %9 = math.exp %8 : vector<8x8x128xf32>
    %cst_5 = arith.constant 1.000000e+00 : f32
    %10 = vector.broadcast %cst_5 : f32 to vector<8x8x128xf32>
    %11 = arith.addf %10, %9 : vector<8x8x128xf32>
    %12 = arith.divf %10, %11 : vector<8x8x128xf32>
    %13 = vector.extract_strided_slice %12 {offsets = [0, 0, 0], sizes = [8, 8, 32], strides = [1, 1, 1]} : vector<8x8x128xf32> to vector<8x8x32xf32>
    %14 = vector.extract_strided_slice %12 {offsets = [0, 0, 32], sizes = [8, 8, 32], strides = [1, 1, 1]} : vector<8x8x128xf32> to vector<8x8x32xf32>
    %15 = vector.extract_strided_slice %12 {offsets = [0, 0, 64], sizes = [8, 8, 32], strides = [1, 1, 1]} : vector<8x8x128xf32> to vector<8x8x32xf32>
    %cst_6 = arith.constant 2.000000e+00 : f32
    %16 = vector.broadcast %cst_6 : f32 to vector<8x8x32xf32>
    %17 = arith.mulf %16, %15 : vector<8x8x32xf32>
    %cst_7 = arith.constant 1.000000e+00 : f32
    %18 = vector.broadcast %cst_7 : f32 to vector<8x8x32xf32>
    %19 = arith.subf %17, %18 : vector<8x8x32xf32>
    %20 = vector.extract_strided_slice %12 {offsets = [0, 0, 96], sizes = [8, 8, 32], strides = [1, 1, 1]} : vector<8x8x128xf32> to vector<8x8x32xf32>
    %c0_8 = arith.constant 0 : index
    %c0_9 = arith.constant 0 : index
    %21 = vector.load %arg3[%c0_8, %c0_9] : memref<8x32xf32, #tpu.memory_space<vmem>>, vector<8x32xf32>
    %22 = vector.shape_cast %21 : vector<8x32xf32> to vector<1x8x32xf32>
    %23 = vector.broadcast %22 : vector<1x8x32xf32> to vector<8x8x32xf32>
    %24 = arith.mulf %14, %23 : vector<8x8x32xf32>
    %25 = arith.mulf %13, %19 : vector<8x8x32xf32>
    %26 = arith.addf %24, %25 : vector<8x8x32xf32>
    %27 = math.tanh %26 : vector<8x8x32xf32>
    %28 = arith.mulf %20, %27 : vector<8x8x32xf32>
    %29 = vector.shape_cast %28 : vector<8x8x32xf32> to vector<64x32xf32>
    %30 = arith.truncf %29 : vector<64x32xf32> to vector<64x32xbf16>
    %c0_10 = arith.constant 0 : index
    %c0_11 = arith.constant 0 : index
    %31 = vector.load %arg4[%c0_10, %c0_11] : memref<32x16xbf16, #tpu.memory_space<vmem>>, vector<32x16xbf16>
    %cst_12 = arith.constant dense<0.000000e+00> : vector<64x16xf32>
    %32 = tpu.matmul %30, %31, %cst_12 {dimension_numbers = #tpu.dot_dimension_numbers<[1], [0], [0], [1], [0, 0, 1, 1], [], []>} : vector<64x32xbf16>, vector<32x16xbf16>, vector<64x16xf32> -> vector<64x16xf32>
    %c0_13 = arith.constant 0 : index
    %c0_14 = arith.constant 0 : index
    %33 = vector.load %arg5[%c0_13, %c0_14] : memref<1x16xf32, #tpu.memory_space<vmem>>, vector<1x16xf32>
    %34 = vector.broadcast %33 : vector<1x16xf32> to vector<64x16xf32>
    %35 = arith.addf %32, %34 : vector<64x16xf32>
    %36 = vector.shape_cast %35 : vector<64x16xf32> to vector<8x8x16xf32>
    %c0_15 = arith.constant 0 : index
    %c0_16 = arith.constant 0 : index
    %c0_17 = arith.constant 0 : index
    %37 = vector.load %arg6[%c0_15, %c0_16, %c0_17] : memref<8x8x16xf32, #tpu.memory_space<vmem>>, vector<8x8x16xf32>
    tpu.vector_store %arg6[%c0_15, %c0_16, %c0_17], %36 {strides = array<i32>} : memref<8x8x16xf32, #tpu.memory_space<vmem>>, vector<8x8x16xf32>,
    return
  }
}

</mosaic_0001>

<llo_original>
// kernel: tpu_custom_call.1
$region0: #{tpu_custom_call.1}
  #allocation0 [shape = 'u32[]', space=smem, size = 0x4, offset = 0x4, fixed_abs, tag = 'smem constant byte address 0x4 - core index']
  #allocation1 [shape = 'u32[144,128]{1,0:T(1,128)}', space=vmem, size = 0x12000, scoped, tag = 'internal scratch']
  %s0 = inlined_call_operand.vmem [shape: bf16[64,16], index: 0, kind: input, shape index: {}]
  %s1 = inlined_call_operand.vmem [shape: bf16[16,128], index: 1, kind: input, shape index: {}]
  %s2 = inlined_call_operand.vmem [shape: f32[8,128], index: 2, kind: input, shape index: {}]
  %s3 = inlined_call_operand.vmem [shape: f32[8,32], index: 3, kind: input, shape index: {}]
  %s4 = inlined_call_operand.vmem [shape: bf16[32,16], index: 4, kind: input, shape index: {}]
  %s5 = inlined_call_operand.vmem [shape: f32[1,16], index: 5, kind: input, shape index: {}]
  %s6 = inlined_call_operand.hbm [shape: f32[8,8,16], index: 6, kind: output, shape index: {}]
  %s7 = sld [smem:[#allocation0]]
  $region34: #{tpu_custom_call.1} parent=0
    _
  %s9 = ssub.s32 1, %s7
  %s10 = scalar_select 0, %s9, %s7
  $region1: #{tpu_custom_call.1} parent=0
    #allocation2 [shape = 'u8[32768]{0}', space=vmem, size = 0x8000, scoped, tag = 'output window, operand 0, single buffered']
    #allocation3 [shape = 's32[1]{0}', space=sflag, size = 0x4, scoped, tag = 'scoped memory for tpu_custom_call.1']
    %11 = vsyncpa [#allocation3], 0
    // Predicated region
    $region2: #{tpu_custom_call.1} parent=1 // pred_check
      _
    $region3: #{tpu_custom_call.1} parent=1 // pred_check_branch
      %13 = sbr.rel (0) target = $region5
    $region4: #{tpu_custom_call.1} parent=1 // pred_region
      _
    $region5: #{tpu_custom_call.1} parent=1 // pred_fallthru
      _
    // Predicated region
    $region6: #{tpu_custom_call.1} parent=1 // pred_check
      _
    $region7: #{tpu_custom_call.1} parent=1 // pred_check_branch
      %15 = sbr.rel (0) target = $region9
    $region8: #{tpu_custom_call.1} parent=1 // pred_region
      _
    $region9: #{tpu_custom_call.1} parent=1 // pred_fallthru
      _
    // Predicated region
    $region10: #{tpu_custom_call.1} parent=1 // pred_check
      _
    $region11: #{tpu_custom_call.1} parent=1 // pred_check_branch
      %17 = sbr.rel (0) target = $region13
    $region12: #{tpu_custom_call.1} parent=1 // pred_region
      _
    $region13: #{tpu_custom_call.1} parent=1 // pred_fallthru
      _
    // Predicated region
    $region14: #{tpu_custom_call.1} parent=1 // pred_check
      _
    $region15: #{tpu_custom_call.1} parent=1 // pred_check_branch
      %19 = sbr.rel (0) target = $region17
    $region16: #{tpu_custom_call.1} parent=1 // pred_region
      _
    $region17: #{tpu_custom_call.1} parent=1 // pred_fallthru
      _
    // Predicated region
    $region18: #{tpu_custom_call.1} parent=1 // pred_check
      _
    $region19: #{tpu_custom_call.1} parent=1 // pred_check_branch
      %21 = sbr.rel (0) target = $region21
    $region20: #{tpu_custom_call.1} parent=1 // pred_region
      _
    $region21: #{tpu_custom_call.1} parent=1 // pred_fallthru
      _
    // Predicated region
    $region22: #{tpu_custom_call.1} parent=1 // pred_check
      _
    $region23: #{tpu_custom_call.1} parent=1 // pred_check_branch
      %23 = sbr.rel (0) target = $region25
    $region24: #{tpu_custom_call.1} parent=1 // pred_region
      _
    $region25: #{tpu_custom_call.1} parent=1 // pred_fallthru
      _
    %v25 = vld [vmem:[%s0] sm:$0xf]
    %v26 = vld [vmem:[%s0 + $0x4] sm:$0xf]
    %v27 = vld [vmem:[%s0 + $0x8] sm:$0xf]
    %v28 = vld [vmem:[%s0 + $0xc] sm:$0xf]
    %v29 = vld [vmem:[%s0 + $0x10] sm:$0xf]
    %v30 = vld [vmem:[%s0 + $0x14] sm:$0xf]
    %v31 = vld [vmem:[%s0 + $0x18] sm:$0xf]
    %v32 = vld [vmem:[%s0 + $0x1c] sm:$0xf]
    %v33 = vld [vmem:[%s1] sm:$0xf]
    %v34 = vld [vmem:[%s1 + $0x4] sm:$0xf]
    %v43 = vunpack.c.l.b16 %v25
    %v44 = vunpack.c.l.b16 %v26
    %v45 = vunpack.c.l.b16 %v27
    %v46 = vunpack.c.l.b16 %v28
    %v47 = vunpack.c.l.b16 %v29
    %v48 = vunpack.c.l.b16 %v30
    %v49 = vunpack.c.l.b16 %v31
    %v50 = vunpack.c.l.b16 %v32
    %v51 = vpack.c.b16 %v44, %v43
    %v52 = vpack.c.b16 %v46, %v45
    %v53 = vpack.c.b16 %v48, %v47
    %v54 = vpack.c.b16 %v50, %v49
    %v57 = vunpack.c.l.b16 %v33
    %v58 = vunpack.c.l.b16 %v34
    %v59 = vpack.c.b16 %v58, %v57
    %vm61 = vcmask 130048
    %v63 = vsel %vm61, %v51, 0
    %v66 = vsel %vm61, %v52, 0
    %v69 = vsel %vm61, %v53, 0
    %v72 = vsel %vm61, %v54, 0
    %74 = vmatprep.subr.bf16.mxu0 0
    %75 = vmatpush1.bf16.msra.mxu0 %v59
    %76 = vmatprep.subr.bf16.mxu0 0
    %77 = vmatpush1.bf16.msra.mxu0 0
    %78 = vmatprep.subr.bf16.mxu0 0
    %79 = vmatpush1.bf16.msra.mxu0 0
    %80 = vmatprep.subr.bf16.mxu0 0
    %81 = vmatpush1.bf16.msra.mxu0 0
    %82 = vmatprep.subr.bf16.mxu0 0
    %83 = vmatpush1.bf16.msra.mxu0 0
    %84 = vmatprep.subr.bf16.mxu0 0
    %85 = vmatpush1.bf16.msra.mxu0 0
    %86 = vmatprep.subr.bf16.mxu0 0
    %87 = vmatpush1.bf16.msra.mxu0 0
    %88 = vmatprep.subr.bf16.mxu0 0
    %89 = vmatpush1.bf16.msra.mxu0 0
    %90 = vmatprep.subr.bf16.mxu0 0
    %91 = vmatpush1.bf16.msra.mxu0 0
    %92 = vmatprep.subr.bf16.mxu0 0
    %93 = vmatpush1.bf16.msra.mxu0 0
    %94 = vmatprep.subr.bf16.mxu0 0
    %95 = vmatpush1.bf16.msra.mxu0 0
    %96 = vmatprep.subr.bf16.mxu0 0
    %97 = vmatpush1.bf16.msra.mxu0 0
    %98 = vmatprep.subr.bf16.mxu0 0
    %99 = vmatpush1.bf16.msra.mxu0 0
    %100 = vmatprep.subr.bf16.mxu0 0
    %101 = vmatpush1.bf16.msra.mxu0 0
    %102 = vmatprep.subr.bf16.mxu0 0
    %103 = vmatpush1.bf16.msra.mxu0 0
    %104 = vmatprep.subr.bf16.mxu0 0
    %105 = vmatpush1.bf16.msra.mxu0 0
    %106 = vmatprep.mubr.bf16.mxu0 0
    %107 = vmatmul.mubr.bf16.gmra.mrb[0].mxu0 %v63
    %v108 = vpop.f32.mrb[0].mxu0
    %v109 = vadd.f32 0.0, %v108
    %v110 = vpop.f32.mrb[0].mxu0
    %v111 = vpop.f32.mrb[0].mxu0
    %v112 = vadd.f32 0.0, %v111
    %v113 = vpop.f32.mrb[0].mxu0
    %114 = vmatprep.mubr.bf16.mxu0 0
    %115 = vmatmul.mubr.bf16.gmra.mrb[0].mxu0 %v66
    %v116 = vpop.f32.mrb[0].mxu0
    %v117 = vadd.f32 0.0, %v116
    %v118 = vpop.f32.mrb[0].mxu0
    %v119 = vpop.f32.mrb[0].mxu0
    %v120 = vadd.f32 0.0, %v119
    %v121 = vpop.f32.mrb[0].mxu0
    %122 = vmatprep.mubr.bf16.mxu0 0
    %123 = vmatmul.mubr.bf16.gmra.mrb[0].mxu0 %v69
    %v124 = vpop.f32.mrb[0].mxu0
    %v125 = vadd.f32 0.0, %v124
    %v126 = vpop.f32.mrb[0].mxu0
    %v127 = vpop.f32.mrb[0].mxu0
    %v128 = vadd.f32 0.0, %v127
    %v129 = vpop.f32.mrb[0].mxu0
    %130 = vmatprep.mubr.bf16.mxu0 0
    %131 = vmatmul.mubr.bf16.gmra.mrb[0].mxu0 %v72
    %v132 = vpop.f32.mrb[0].mxu0
    %v133 = vadd.f32 0.0, %v132
    %v134 = vpop.f32.mrb[0].mxu0
    %v135 = vpop.f32.mrb[0].mxu0
    %v136 = vadd.f32 0.0, %v135
    %v137 = vpop.f32.mrb[0].mxu0
    %138 = vdwg.mxu0
    %v139 = vld [vmem:[%s2] sm:$0xff]
    %v140 = vadd.f32 %v109, %v139
    %v141 = vadd.f32 %v112, %v139
    %v142 = vadd.f32 %v117, %v139
    %v143 = vadd.f32 %v120, %v139
    %v144 = vadd.f32 %v125, %v139
    %v145 = vadd.f32 %v128, %v139
    %v146 = vadd.f32 %v133, %v139
    %v147 = vadd.f32 %v136, %v139
    %v148 = vxor.u32 %v140, 2147483648
    %v149 = vxor.u32 %v141, 2147483648
    %v150 = vxor.u32 %v142, 2147483648
    %v151 = vxor.u32 %v143, 2147483648
    %v152 = vxor.u32 %v144, 2147483648
    %v153 = vxor.u32 %v145, 2147483648
    %v154 = vxor.u32 %v146, 2147483648
    %v155 = vxor.u32 %v147, 2147483648
    %v156 = vmul.f32 %v148, 1.442695
    %v157 = vpow.pop %v156
    %v158 = vmul.f32 %v149, 1.442695
    %v159 = vpow.pop %v158
    %v160 = vmul.f32 %v150, 1.442695
    %v161 = vpow.pop %v160
    %v162 = vmul.f32 %v151, 1.442695
    %v163 = vpow.pop %v162
    %v164 = vmul.f32 %v152, 1.442695
    %v165 = vpow.pop %v164
    %v166 = vmul.f32 %v153, 1.442695
    %v167 = vpow.pop %v166
    %v168 = vmul.f32 %v154, 1.442695
    %v169 = vpow.pop %v168
    %v170 = vmul.f32 %v155, 1.442695
    %v171 = vpow.pop %v170
    %v172 = vadd.f32 %v157, 1.0
    %v173 = vadd.f32 %v159, 1.0
    %v174 = vadd.f32 %v161, 1.0
    %v175 = vadd.f32 %v163, 1.0
    %v176 = vadd.f32 %v165, 1.0
    %v177 = vadd.f32 %v167, 1.0
    %v178 = vadd.f32 %v169, 1.0
    %v179 = vadd.f32 %v171, 1.0
    %v180 = vrcp.pop %v172
    %v181 = vmul.f32 1.0, %v180
    %v182 = vrcp.pop %v173
    %v183 = vmul.f32 1.0, %v182
    %v184 = vrcp.pop %v174
    %v185 = vmul.f32 1.0, %v184
    %v186 = vrcp.pop %v175
    %v187 = vmul.f32 1.0, %v186
    %v188 = vrcp.pop %v176
    %v189 = vmul.f32 1.0, %v188
    %v190 = vrcp.pop %v177
    %v191 = vmul.f32 1.0, %v190
    %v192 = vrcp.pop %v178
    %v193 = vmul.f32 1.0, %v192
    %v194 = vrcp.pop %v179
    %v195 = vmul.f32 1.0, %v194
    %v196 = vmul.f32 %v181, 2.0
    %v197 = vmul.f32 %v183, 2.0
    %v198 = vmul.f32 %v185, 2.0
    %v199 = vmul.f32 %v187, 2.0
    %v200 = vmul.f32 %v189, 2.0
    %v201 = vmul.f32 %v191, 2.0
    %v202 = vmul.f32 %v193, 2.0
    %v203 = vmul.f32 %v195, 2.0
    %v204 = vsub.f32 %v196, 1.0
    %v205 = vsub.f32 %v197, 1.0
    %v206 = vsub.f32 %v198, 1.0
    %v207 = vsub.f32 %v199, 1.0
    %v208 = vsub.f32 %v200, 1.0
    %v209 = vsub.f32 %v201, 1.0
    %v210 = vsub.f32 %v202, 1.0
    %v211 = vsub.f32 %v203, 1.0
    %v212 = vld [vmem:[%s3] sm:$0xff]
    %214 = vrot.lane.b32.xlu0 %v212, 32
    %v215 = vpop.permute.xlu0 %214
    %v217 = vmul.f32 %v181, %v215
    %v218 = vmul.f32 %v183, %v215
    %v219 = vmul.f32 %v185, %v215
    %v220 = vmul.f32 %v187, %v215
    %v221 = vmul.f32 %v189, %v215
    %v222 = vmul.f32 %v191, %v215
    %v223 = vmul.f32 %v193, %v215
    %v224 = vmul.f32 %v195, %v215
    %233 = vrot.lane.b32.xlu0 %v204, 64
    %v234 = vpop.permute.xlu0 %233
    %235 = vrot.lane.b32.xlu0 %v205, 64
    %v236 = vpop.permute.xlu0 %235
    %237 = vrot.lane.b32.xlu0 %v206, 64
    %v238 = vpop.permute.xlu0 %237
    %239 = vrot.lane.b32.xlu0 %v207, 64
    %v240 = vpop.permute.xlu0 %239
    %241 = vrot.lane.b32.xlu0 %v208, 64
    %v242 = vpop.permute.xlu0 %241
    %243 = vrot.lane.b32.xlu0 %v209, 64
    %v244 = vpop.permute.xlu0 %243
    %245 = vrot.lane.b32.xlu0 %v210, 64
    %v246 = vpop.permute.xlu0 %245
    %247 = vrot.lane.b32.xlu0 %v211, 64
    %v248 = vpop.permute.xlu0 %247
    %v257 = vmul.f32 %v181, %v234
    %v258 = vmul.f32 %v183, %v236
    %v259 = vmul.f32 %v185, %v238
    %v260 = vmul.f32 %v187, %v240
    %v261 = vmul.f32 %v189, %v242
    %v262 = vmul.f32 %v191, %v244
    %v263 = vmul.f32 %v193, %v246
    %v264 = vmul.f32 %v195, %v248
    %273 = vrot.lane.b32.xlu0 %v257, 32
    %v274 = vpop.permute.xlu0 %273
    %275 = vrot.lane.b32.xlu0 %v258, 32
    %v276 = vpop.permute.xlu0 %275
    %277 = vrot.lane.b32.xlu0 %v259, 32
    %v278 = vpop.permute.xlu0 %277
    %279 = vrot.lane.b32.xlu0 %v260, 32
    %v280 = vpop.permute.xlu0 %279
    %281 = vrot.lane.b32.xlu0 %v261, 32
    %v282 = vpop.permute.xlu0 %281
    %283 = vrot.lane.b32.xlu0 %v262, 32
    %v284 = vpop.permute.xlu0 %283
    %285 = vrot.lane.b32.xlu0 %v263, 32
    %v286 = vpop.permute.xlu0 %285
    %287 = vrot.lane.b32.xlu0 %v264, 32
    %v288 = vpop.permute.xlu0 %287
    %v297 = vadd.f32 %v217, %v274
    %v298 = vadd.f32 %v218, %v276
    %v299 = vadd.f32 %v219, %v278
    %v300 = vadd.f32 %v220, %v280
    %v301 = vadd.f32 %v221, %v282
    %v302 = vadd.f32 %v222, %v284
    %v303 = vadd.f32 %v223, %v286
    %v304 = vadd.f32 %v224, %v288
    %v305 = vtanh.pop %v297
    %v306 = vtanh.pop %v298
    %v307 = vtanh.pop %v299
    %v308 = vtanh.pop %v300
    %v309 = vtanh.pop %v301
    %v310 = vtanh.pop %v302
    %v311 = vtanh.pop %v303
    %v312 = vtanh.pop %v304
    %321 = vrot.lane.b32.xlu0 %v305, 64
    %v322 = vpop.permute.xlu0 %321
    %323 = vrot.lane.b32.xlu0 %v306, 64
    %v324 = vpop.permute.xlu0 %323
    %325 = vrot.lane.b32.xlu0 %v307, 64
    %v326 = vpop.permute.xlu0 %325
    %327 = vrot.lane.b32.xlu0 %v308, 64
    %v328 = vpop.permute.xlu0 %327
    %329 = vrot.lane.b32.xlu0 %v309, 64
    %v330 = vpop.permute.xlu0 %329
    %331 = vrot.lane.b32.xlu0 %v310, 64
    %v332 = vpop.permute.xlu0 %331
    %333 = vrot.lane.b32.xlu0 %v311, 64
    %v334 = vpop.permute.xlu0 %333
    %335 = vrot.lane.b32.xlu0 %v312, 64
    %v336 = vpop.permute.xlu0 %335
    %v345 = vmul.f32 %v181, %v322
    %v346 = vmul.f32 %v183, %v324
    %v347 = vmul.f32 %v185, %v326
    %v348 = vmul.f32 %v187, %v328
    %v349 = vmul.f32 %v189, %v330
    %v350 = vmul.f32 %v191, %v332
    %v351 = vmul.f32 %v193, %v334
    %v352 = vmul.f32 %v195, %v336
    %v353 = vpack.c.bf16 %v346, %v345
    %v354 = vpack.c.bf16 %v348, %v347
    %v355 = vpack.c.bf16 %v350, %v349
    %v356 = vpack.c.bf16 %v352, %v351
    %v357 = vld [vmem:[%s4] sm:$0xf]
    %v358 = vld [vmem:[%s4 + $0x4] sm:$0xf]
    %v359 = vld [vmem:[%s4 + $0x8] sm:$0xf]
    %v360 = vld [vmem:[%s4 + $0xc] sm:$0xf]
    %v361 = vld [vmem:[%s5] sm:$0x1]
    %v363 = vlaneseq
    %v364 = vshrl.u32 %v363, 7
    %v365 = vsub.s32 0, %v364
    %v366 = vrot.slane %v361, %v365
    %372 = vrot.lane.b32.xlu0 %v353, 32
    %v373 = vpop.permute.xlu0 %372
    %374 = vrot.lane.b32.xlu0 %v354, 32
    %v375 = vpop.permute.xlu0 %374
    %376 = vrot.lane.b32.xlu0 %v355, 32
    %v377 = vpop.permute.xlu0 %376
    %378 = vrot.lane.b32.xlu0 %v356, 32
    %v379 = vpop.permute.xlu0 %378
    %v384 = vunpack.c.l.b16 %v357
    %v385 = vunpack.c.l.b16 %v358
    %v386 = vunpack.c.l.b16 %v359
    %v387 = vunpack.c.l.b16 %v360
    %v388 = vpack.c.b16 %v385, %v384
    %v389 = vpack.c.b16 %v387, %v386
    %vm392 = vcmask 261120
    %v394 = vsel %vm392, %v373, 0
    %v397 = vsel %vm392, %v375, 0
    %v400 = vsel %vm392, %v377, 0
    %v403 = vsel %vm392, %v379, 0
    %405 = vmatprep.subr.bf16.mxu0 0
    %406 = vmatpush1.bf16.msra.mxu0 %v388
    %407 = vmatprep.subr.bf16.mxu0 0
    %408 = vmatpush1.bf16.msra.mxu0 %v389
    %409 = vmatprep.subr.bf16.mxu0 0
    %410 = vmatpush1.bf16.msra.mxu0 0
    %411 = vmatprep.subr.bf16.mxu0 0
    %412 = vmatpush1.bf16.msra.mxu0 0
    %413 = vmatprep.subr.bf16.mxu0 0
    %414 = vmatpush1.bf16.msra.mxu0 0
    %415 = vmatprep.subr.bf16.mxu0 0
    %416 = vmatpush1.bf16.msra.mxu0 0
    %417 = vmatprep.subr.bf16.mxu0 0
    %418 = vmatpush1.bf16.msra.mxu0 0
    %419 = vmatprep.subr.bf16.mxu0 0
    %420 = vmatpush1.bf16.msra.mxu0 0
    %421 = vmatprep.subr.bf16.mxu0 0
    %422 = vmatpush1.bf16.msra.mxu0 0
    %423 = vmatprep.subr.bf16.mxu0 0
    %424 = vmatpush1.bf16.msra.mxu0 0
    %425 = vmatprep.subr.bf16.mxu0 0
    %426 = vmatpush1.bf16.msra.mxu0 0
    %427 = vmatprep.subr.bf16.mxu0 0
    %428 = vmatpush1.bf16.msra.mxu0 0
    %429 = vmatprep.subr.bf16.mxu0 0
    %430 = vmatpush1.bf16.msra.mxu0 0
    %431 = vmatprep.subr.bf16.mxu0 0
    %432 = vmatpush1.bf16.msra.mxu0 0
    %433 = vmatprep.subr.bf16.mxu0 0
    %434 = vmatpush1.bf16.msra.mxu0 0
    %435 = vmatprep.subr.bf16.mxu0 0
    %436 = vmatpush1.bf16.msra.mxu0 0
    %437 = vmatprep.mubr.bf16.mxu0 0
    %438 = vmatmul.mubr.bf16.gmra.mrb[0].mxu0 %v394
    %v439 = vpop.f32.mrb[0].mxu0
    %v440 = vadd.f32 %v366, %v439
    %v441 = vpop.f32.mrb[0].mxu0
    %v442 = vpop.f32.mrb[0].mxu0
    %v443 = vadd.f32 %v366, %v442
    %v444 = vpop.f32.mrb[0].mxu0
    %445 = vmatprep.mubr.bf16.mxu0 0
    %446 = vmatmul.mubr.bf16.gmra.mrb[0].mxu0 %v397
    %v447 = vpop.f32.mrb[0].mxu0
    %v448 = vadd.f32 %v366, %v447
    %v449 = vpop.f32.mrb[0].mxu0
    %v450 = vpop.f32.mrb[0].mxu0
    %v451 = vadd.f32 %v366, %v450
    %v452 = vpop.f32.mrb[0].mxu0
    %453 = vmatprep.mubr.bf16.mxu0 0
    %454 = vmatmul.mubr.bf16.gmra.mrb[0].mxu0 %v400
    %v455 = vpop.f32.mrb[0].mxu0
    %v456 = vadd.f32 %v366, %v455
    %v457 = vpop.f32.mrb[0].mxu0
    %v458 = vpop.f32.mrb[0].mxu0
    %v459 = vadd.f32 %v366, %v458
    %v460 = vpop.f32.mrb[0].mxu0
    %461 = vmatprep.mubr.bf16.mxu0 0
    %462 = vmatmul.mubr.bf16.gmra.mrb[0].mxu0 %v403
    %v463 = vpop.f32.mrb[0].mxu0
    %v464 = vadd.f32 %v366, %v463
    %v465 = vpop.f32.mrb[0].mxu0
    %v466 = vpop.f32.mrb[0].mxu0
    %v467 = vadd.f32 %v366, %v466
    %v468 = vpop.f32.mrb[0].mxu0
    %469 = vdwg.mxu0
    %470 = vst.msk [vmem:[#allocation2] sm:$0xff] %vm61, %v440
    %471 = vst.msk [vmem:[#allocation2 + $0x8] sm:$0xff] %vm61, %v443
    %472 = vst.msk [vmem:[#allocation2 + $0x10] sm:$0xff] %vm61, %v448
    %473 = vst.msk [vmem:[#allocation2 + $0x18] sm:$0xff] %vm61, %v451
    %474 = vst.msk [vmem:[#allocation2 + $0x20] sm:$0xff] %vm61, %v456
    %475 = vst.msk [vmem:[#allocation2 + $0x28] sm:$0xff] %vm61, %v459
    %476 = vst.msk [vmem:[#allocation2 + $0x30] sm:$0xff] %vm61, %v464
    %477 = vst.msk [vmem:[#allocation2 + $0x38] sm:$0xff] %vm61, %v467
    // Predicated region
    $region26: #{tpu_custom_call.1} parent=1 // pred_check
      _
    $region27: #{tpu_custom_call.1} parent=1 // pred_check_branch
      %479 = sbr.rel (0) target = $region29
    $region28: #{tpu_custom_call.1} parent=1 // pred_region
      %s481 = ssub.s32 1024, 1024
      %482 = vsyncadd [#allocation3], %s481
      %s483 = sshll.u32 [#allocation2], 4
      %s484 = int_to_ptr.vmem [resolvable:$true] %s483
      %489 = dma.vmem_to_hbm [thread:$0]  %s484, 1024, %s6, [#allocation3], 128, 128, 8
    $region29: #{tpu_custom_call.1} parent=1 // pred_fallthru
      _
    // Predicated region
    $region30: #{tpu_custom_call.1} parent=1 // pred_check
      _
    $region31: #{tpu_custom_call.1} parent=1 // pred_check_branch
      %491 = sbr.rel (0) target = $region33
    $region32: #{tpu_custom_call.1} parent=1 // pred_region
      %492 = dma.done [#allocation3], 1024
    $region33: #{tpu_custom_call.1} parent=1 // pred_fallthru
      _
    %493 = vsyncpa [#allocation3], 1

</llo_original>
